<compile_context>
chip_gen: v7x
topology: tpu7x:2x2x1
jax: 0.10.0
libtpu: 0.0.40
codegen_flags: <defaults>
</compile_context>

<pallas_src>
import functools
import math

import jax
import jax.numpy as jnp
from jax.experimental import pallas as pl
from jax.experimental.pallas import tpu as pltpu

_MIB = 1024 * 1024


def _round_up(x, m):
    return ((x + m - 1) // m) * m


def _cdiv(a, b):
    return (a + b - 1) // b


def _make_gcn_kernel(*, apply_w, x_resident, tk, compute_dtype):
    """Computes relu((A @ X) [@ W] + b) over a (row-tile, K-tile) grid."""

    def _tiles(a_ref, x_ref):
        k = pl.program_id(1)
        a = a_ref[...]
        if x_resident:
            start = pl.multiple_of(k * tk, 128)
            x = x_ref[pl.ds(start, tk), :]
        else:
            x = x_ref[...]
        if a.dtype != compute_dtype:
            a = a.astype(compute_dtype)   # cast in VMEM (VPU), not on host
        if x.dtype != compute_dtype:
            x = x.astype(compute_dtype)
        return a, x

    if apply_w:

        def kernel(a_ref, x_ref, w_ref, b_ref, out_ref, acc_ref):
            k = pl.program_id(1)

            @pl.when(k == 0)
            def _init():
                acc_ref[...] = jnp.zeros_like(acc_ref)

            a, x = _tiles(a_ref, x_ref)
            acc_ref[...] += jnp.dot(a, x, preferred_element_type=jnp.float32)

            @pl.when(k == pl.num_programs(1) - 1)
            def _finalize():
                # Small per-row-tile matmul. W stays f32 so the f32-accumulated
                # A@X intermediate is not rounded to bf16 before applying W.
                h = jnp.dot(
                    acc_ref[...], w_ref[...], preferred_element_type=jnp.float32
                )
                out_ref[...] = jnp.maximum(h + b_ref[...], 0.0)

    else:

        def kernel(a_ref, x_ref, b_ref, out_ref):
            k = pl.program_id(1)

            @pl.when(k == 0)
            def _init():
                out_ref[...] = jnp.zeros_like(out_ref)

            a, x = _tiles(a_ref, x_ref)
            # Accumulate straight into the resident f32 output block.
            out_ref[...] += jnp.dot(a, x, preferred_element_type=jnp.float32)

            @pl.when(k == pl.num_programs(1) - 1)
            def _finalize():
                out_ref[...] = jnp.maximum(out_ref[...] + b_ref[...], 0.0)

    return kernel


@functools.partial(jax.jit, static_argnames=("use_bf16",))
def gcn_forward(nfs, A, W, bias, *, use_bf16=True):
    """nfs: (N, F) f32, A: (N, N) f32, W: (F, H) f32, bias: (H,) f32 -> (N, H) f32."""
    N, F = nfs.shape
    H = W.shape[1]
    assert A.shape == (N, N)
    assert W.shape == (F, H)
    assert bias.shape == (H,)

    compute_dtype = jnp.bfloat16 if use_bf16 else jnp.float32

    Fpad = _round_up(F, 128)
    Hpad = _round_up(H, 128)

    # Association choice on *padded* widths: only keep W inside the kernel when
    # it genuinely narrows the streamed feature dim (and is small enough to be
    # resident). Otherwise form nfs @ W once in XLA and stream A @ (nfs @ W).
    apply_w = (Fpad < Hpad) and (2 * Fpad * Hpad * 4 <= 8 * _MIB)
    if apply_w:
        X = nfs
        D, Dpad = F, Fpad
    else:
        prec = None if use_bf16 else jax.lax.Precision.HIGHEST
        X = jnp.dot(nfs, W, preferred_element_type=jnp.float32, precision=prec)
        D, Dpad = H, Hpad

    # ---- Tile selection (tight padding, budget-derived per shape) ------------
    # Row tiles: out (double-buffered) + acc budget ~12 MiB; >= 2 tiles once N
    # is moderately large so v7x's 2 TensorCores both engage ("parallel" axis).
    TM_CAP = min(1024, max(8, ((12 * _MIB) // (4 * (2 * Hpad + Dpad))) // 8 * 8))
    min_row_tiles = 2 if N >= 256 else 1
    t = max(_cdiv(N, TM_CAP), min_row_tiles)
    TM = _round_up(_cdiv(N, t), 8)
    Nrows = t * TM

    # K tiles: double-buffered A tile budget ~16 MiB (assume 4 B/elem so the
    # no-pad f32-A path also fits); N padded only to a multiple of 128.
    TK_CAP = min(4096, max(128, ((16 * _MIB) // (2 * TM * 4)) // 128 * 128))
    Nk_raw = _round_up(N, 128)
    kt = max(_cdiv(Nk_raw, TK_CAP), 1)
    TK = _round_up(_cdiv(Nk_raw, kt), 128)
    Nk = kt * TK

    # ---- Operand staging ------------------------------------------------------
    # A: avoid the host pad+cast pass when N already tiles exactly — stream raw
    # f32 A and cast per-tile in VMEM. Otherwise one pad pass in the MXU dtype.
    need_pad_a = (Nrows != N) or (Nk != N)
    if need_pad_a:
        A_in = jnp.zeros((Nrows, Nk), compute_dtype).at[:N, :N].set(
            A.astype(compute_dtype)
        )
    else:
        A_in = A
    a_item = jnp.dtype(A_in.dtype).itemsize

    need_pad_x = (Nk != N) or (Dpad != D)
    if need_pad_x:
        x_store = compute_dtype if use_bf16 else jnp.float32
        X_in = jnp.zeros((Nk, Dpad), x_store).at[:N, :D].set(X.astype(x_store))
    else:
        X_in = X
    x_item = jnp.dtype(X_in.dtype).itemsize

    # X residency: keep the whole (Nk, Dpad) slab in VMEM (fetched once) when it
    # fits the budget; slice K tiles in-kernel. Otherwise stream (TK, Dpad).
    x_resident = 2 * Nk * Dpad * x_item <= 12 * _MIB
    if x_resident:
        x_spec = pl.BlockSpec((Nk, Dpad), lambda i, k: (0, 0))
    else:
        x_spec = pl.BlockSpec((TK, Dpad), lambda i, k: (k, 0))

    inputs = [A_in, X_in]
    in_specs = [
        pl.BlockSpec((TM, TK), lambda i, k: (i, k)),  # A streamed tile-by-tile
        x_spec,
    ]
    w_bytes = 0
    if apply_w:
        W_in = jnp.zeros((Dpad, Hpad), jnp.float32).at[:F, :H].set(W)
        inputs.append(W_in)
        in_specs.append(pl.BlockSpec((Dpad, Hpad), lambda i, k: (0, 0)))  # resident
        w_bytes = Dpad * Hpad * 4
    b_in = jnp.zeros((1, Hpad), jnp.float32).at[0, :H].set(bias)
    inputs.append(b_in)
    in_specs.append(pl.BlockSpec((1, Hpad), lambda i, k: (0, 0)))  # resident

    grid = (t, kt)
    scratch_shapes = [pltpu.VMEM((TM, Dpad), jnp.float32)] if apply_w else []

    # Advisory cost estimate so XLA can schedule around the call.
    flops = 2 * Nrows * Nk * Dpad + (2 * Nrows * Dpad * Hpad if apply_w else 0)
    x_stream_bytes = Nk * Dpad * x_item * (1 if x_resident else t)
    bytes_accessed = (
        Nrows * Nk * a_item
        + x_stream_bytes
        + w_bytes
        + Hpad * 4
        + Nrows * Hpad * 4
    )
    cost = pl.CostEstimate(
        flops=int(flops), transcendentals=0, bytes_accessed=int(bytes_accessed)
    )

    # VMEM footprint (double-buffered A / X / out, resident W + bias, acc).
    x_vmem = 2 * (Nk * Dpad if x_resident else TK * Dpad) * x_item
    vmem_bytes = (
        2 * TM * TK * a_item
        + x_vmem
        + 2 * w_bytes
        + 2 * Hpad * 4
        + 2 * TM * Hpad * 4
        + (TM * Dpad * 4 if apply_w else 0)
    )
    # Sized against v7x's 64 MiB per-core VMEM (smallest of the targets).
    vmem_limit = int(min(max(vmem_bytes + 4 * _MIB, 16 * _MIB), 48 * _MIB))

    kernel = _make_gcn_kernel(
        apply_w=apply_w,
        x_resident=x_resident,
        tk=TK,
        compute_dtype=compute_dtype,
    )

    out_p = pl.pallas_call(
        kernel,
        out_shape=jax.ShapeDtypeStruct((Nrows, Hpad), jnp.float32),
        grid_spec=pltpu.PrefetchScalarGridSpec(
            num_scalar_prefetch=0,
            grid=grid,
            in_specs=in_specs,
            out_specs=pl.BlockSpec((TM, Hpad), lambda i, k: (i, 0)),
            scratch_shapes=scratch_shapes,
        ),
        compiler_params=pltpu.CompilerParams(
            dimension_semantics=("parallel", "arbitrary"),
            vmem_limit_bytes=vmem_limit,
        ),
        cost_estimate=cost,
    )(*inputs)

    return out_p[:N, :H]


def gcn_reference(nfs, A, W, bias):
    return jnp.maximum(A @ (nfs @ W) + bias, 0.0)


if __name__ == "__main__":
    # Module config: input_features=F, n_h=H; graph with N nodes.
    N, F, H = 8, 16, 32

    key = jax.random.PRNGKey(0)
    k_nfs, k_a, k_w, k_b = jax.random.split(key, 4)

    # Deterministic parameter init matching torch uniform_(-stdv, stdv), stdv=1/sqrt(n_h).
    stdv = 1.0 / math.sqrt(H)
    W = jax.random.uniform(k_w, (F, H), jnp.float32, minval=-stdv, maxval=stdv)
    bias = jax.random.uniform(k_b, (H,), jnp.float32, minval=-stdv, maxval=stdv)

    # Inputs: node features and a row-normalized dense adjacency.
    nfs = jax.random.normal(k_nfs, (N, F), jnp.float32)
    A_raw = jax.random.uniform(k_a, (N, N), jnp.float32)
    A = A_raw / jnp.sum(A_raw, axis=1, keepdims=True)

    ref = gcn_reference(nfs, A, W, bias)

    # Exact (f32 MXU) path: tight tolerance.
    out_f32 = jax.block_until_ready(gcn_forward(nfs, A, W, bias, use_bf16=False))
    assert out_f32.shape == (N, H)
    assert jnp.allclose(out_f32, ref, atol=1e-5, rtol=1e-5)

    # Fast (bf16 MXU, f32 accumulation) path: loosened tolerance.
    out_bf16 = jax.block_until_ready(gcn_forward(nfs, A, W, bias, use_bf16=True))
    assert out_bf16.shape == (N, H)
    assert jnp.allclose(out_bf16, ref, atol=3e-2, rtol=3e-2)

    # TODO(synk): optional fp8-A path for v7x (A in [0,1]) not emitted — kept bf16/f32 for portability.
    print("KERNEL_OK")
</pallas_src>

<mosaic_0001>
module attributes {stable_mosaic.version = 11 : i64} {
  func.func @kernel(%arg0: i32, %arg1: i32, %arg2: memref<8x128xf32, #tpu.memory_space<vmem>>, %arg3: memref<128x128xf32, #tpu.memory_space<vmem>>, %arg4: memref<1x128xf32, #tpu.memory_space<vmem>>, %arg5: memref<8x128xf32, #tpu.memory_space<vmem>>) attributes {dimension_semantics = [#tpu.dimension_semantics<parallel>, #tpu.dimension_semantics<arbitrary>], iteration_bounds = array<i64: 1, 1>, scalar_prefetch = 0 : i64, scratch_operands = 0 : i64, tpu.core_type = #tpu.core_type<tc>, window_params = [{transform_indices = @transform_0, window_bounds = array<i64: 8, 128>}, {pipeline_mode = #tpu.pipeline_mode<synchronous>, transform_indices = @transform_1, window_bounds = array<i64: 128, 128>}, {pipeline_mode = #tpu.pipeline_mode<synchronous>, transform_indices = @transform_2, window_bounds = array<i64: 1, 128>}, {transform_indices = @transform_3, window_bounds = array<i64: 8, 128>}]} {
    %c0_i32 = arith.constant 0 : i32
    %0 = arith.cmpi eq, %arg1, %c0_i32 : i32
    %1 = arith.extui %0 : i1 to i32
    %c0_i32_0 = arith.constant 0 : i32
    %2 = arith.cmpi ne, %1, %c0_i32_0 : i32
    scf.if %2 {
      %cst_9 = arith.constant 0.000000e+00 : f32
      %15 = vector.broadcast %cst_9 : f32 to vector<8x128xf32>
      %c0_10 = arith.constant 0 : index
      %c0_11 = arith.constant 0 : index
      %16 = vector.load %arg5[%c0_10, %c0_11] : memref<8x128xf32, #tpu.memory_space<vmem>>, vector<8x128xf32>
      tpu.vector_store %arg5[%c0_10, %c0_11], %15 {strides = array<i32>} : memref<8x128xf32, #tpu.memory_space<vmem>>, vector<8x128xf32>,
    } else {
    }
    %c0 = arith.constant 0 : index
    %c0_1 = arith.constant 0 : index
    %3 = vector.load %arg2[%c0, %c0_1] : memref<8x128xf32, #tpu.memory_space<vmem>>, vector<8x128xf32>
    %c128_i32 = arith.constant 128 : i32
    %4 = arith.muli %arg1, %c128_i32 : i32
    %5 = tpu.assume_multiple %4, 128 : i32
    %6 = arith.index_cast %5 : i32 to index
    %c0_2 = arith.constant 0 : index
    %7 = vector.load %arg3[%6, %c0_2] : memref<128x128xf32, #tpu.memory_space<vmem>>, vector<128x128xf32>
    %c0_3 = arith.constant 0 : index
    %c0_4 = arith.constant 0 : index
    %8 = vector.load %arg5[%c0_3, %c0_4] : memref<8x128xf32, #tpu.memory_space<vmem>>, vector<8x128xf32>
    %cst = arith.constant dense<0.000000e+00> : vector<8x128xf32>
    %9 = tpu.matmul %3, %7, %cst {dimension_numbers = #tpu.dot_dimension_numbers<[1], [0], [0], [1], [0, 0, 1, 1], [], []>} : vector<8x128xf32>, vector<128x128xf32>, vector<8x128xf32> -> vector<8x128xf32>
    %10 = arith.addf %8, %9 : vector<8x128xf32>
    %c0_5 = arith.constant 0 : index
    %c0_6 = arith.constant 0 : index
    %11 = vector.load %arg5[%c0_5, %c0_6] : memref<8x128xf32, #tpu.memory_space<vmem>>, vector<8x128xf32>
    tpu.vector_store %arg5[%c0_5, %c0_6], %10 {strides = array<i32>} : memref<8x128xf32, #tpu.memory_space<vmem>>, vector<8x128xf32>,
    %c0_i32_7 = arith.constant 0 : i32
    %12 = arith.cmpi eq, %arg1, %c0_i32_7 : i32
    %13 = arith.extui %12 : i1 to i32
    %c0_i32_8 = arith.constant 0 : i32
    %14 = arith.cmpi ne, %13, %c0_i32_8 : i32
    scf.if %14 {
      %c0_9 = arith.constant 0 : index
      %c0_10 = arith.constant 0 : index
      %15 = vector.load %arg5[%c0_9, %c0_10] : memref<8x128xf32, #tpu.memory_space<vmem>>, vector<8x128xf32>
      %c0_11 = arith.constant 0 : index
      %c0_12 = arith.constant 0 : index
      %16 = vector.load %arg4[%c0_11, %c0_12] : memref<1x128xf32, #tpu.memory_space<vmem>>, vector<1x128xf32>
      %17 = vector.broadcast %16 : vector<1x128xf32> to vector<8x128xf32>
      %18 = arith.addf %15, %17 : vector<8x128xf32>
      %cst_13 = arith.constant 0.000000e+00 : f32
      %19 = vector.broadcast %cst_13 : f32 to vector<8x128xf32>
      %20 = arith.maximumf %18, %19 : vector<8x128xf32>
      %c0_14 = arith.constant 0 : index
      %c0_15 = arith.constant 0 : index
      %21 = vector.load %arg5[%c0_14, %c0_15] : memref<8x128xf32, #tpu.memory_space<vmem>>, vector<8x128xf32>
      tpu.vector_store %arg5[%c0_14, %c0_15], %20 {strides = array<i32>} : memref<8x128xf32, #tpu.memory_space<vmem>>, vector<8x128xf32>,
    } else {
    }
    return
  }
  func.func @transform_0(%arg0: i32, %arg1: i32) -> (i32, i32) {
    %c0_i32 = arith.constant 0 : i32
    return %arg0, %arg1 : i32, i32
  }
  func.func @transform_1(%arg0: i32, %arg1: i32) -> (i32, i32) {
    %c0_i32 = arith.constant 0 : i32
    %c0_i32_0 = arith.constant 0 : i32
    %c0_i32_1 = arith.constant 0 : i32
    return %c0_i32, %c0_i32_0 : i32, i32
  }
  func.func @transform_2(%arg0: i32, %arg1: i32) -> (i32, i32) {
    %c0_i32 = arith.constant 0 : i32
    %c0_i32_0 = arith.constant 0 : i32
    %c0_i32_1 = arith.constant 0 : i32
    return %c0_i32, %c0_i32_0 : i32, i32
  }
  func.func @transform_3(%arg0: i32, %arg1: i32) -> (i32, i32) {
    %c0_i32 = arith.constant 0 : i32
    %c0_i32_0 = arith.constant 0 : i32
    return %arg0, %c0_i32 : i32, i32
  }
}

</mosaic_0001>

<llo_original>
// kernel: gcn_forward.1
$region0: #{gcn_forward.1}
  #allocation0 [shape = 'u32[]', space=smem, size = 0x4, offset = 0x4, fixed_abs, tag = 'smem constant byte address 0x4 - core index']
  #allocation1 [shape = 'u32[144,128]{1,0:T(1,128)}', space=vmem, size = 0x12000, scoped, tag = 'internal scratch']
  %s0 = inlined_call_operand.vmem [shape: f32[8,128], index: 0, kind: input, shape index: {}]
  %s1 = inlined_call_operand.vmem [shape: f32[128,128], index: 1, kind: input, shape index: {}]
  %s2 = inlined_call_operand.vmem [shape: f32[1,128], index: 2, kind: input, shape index: {}]
  %s3 = inlined_call_operand.hbm [shape: f32[8,128], index: 3, kind: output, shape index: {}]
  %s4 = sld [smem:[#allocation0]]
  $region30: #{gcn_forward.1} parent=0
    _
  %s6 = ssub.s32 1, %s4
  %s7 = scalar_select 0, %s6, %s4
  $region1: #{gcn_forward.1} parent=0
    #allocation2 [shape = 'u8[4096]{0}', space=vmem, size = 0x1000, scoped, tag = 'output window, operand 0, single buffered']
    #allocation3 [shape = 's32[1]{0}', space=sflag, size = 0x4, scoped, tag = 'scoped memory for gcn_forward.1']
    %8 = vsyncpa [#allocation3], 0
    // Predicated region
    $region2: #{gcn_forward.1} parent=1 // pred_check
      _
    $region3: #{gcn_forward.1} parent=1 // pred_check_branch
      %10 = sbr.rel (0) target = $region5
    $region4: #{gcn_forward.1} parent=1 // pred_region
      _
    $region5: #{gcn_forward.1} parent=1 // pred_fallthru
      _
    // Predicated region
    $region6: #{gcn_forward.1} parent=1 // pred_check
      _
    $region7: #{gcn_forward.1} parent=1 // pred_check_branch
      %12 = sbr.rel (0) target = $region9
    $region8: #{gcn_forward.1} parent=1 // pred_region
      _
    $region9: #{gcn_forward.1} parent=1 // pred_fallthru
      _
    // Predicated region
    $region10: #{gcn_forward.1} parent=1 // pred_check
      _
    $region11: #{gcn_forward.1} parent=1 // pred_check_branch
      %14 = sbr.rel (0) target = $region13
    $region12: #{gcn_forward.1} parent=1 // pred_region
      _
    $region13: #{gcn_forward.1} parent=1 // pred_fallthru
      _
    %p15 = scmp.eq.s32.totalorder 0, 0
    // Predicated region
    $region14: #{gcn_forward.1} parent=1 // pred_check
      %p16 = pneg %p15
    $region15: #{gcn_forward.1} parent=1 // pred_check_branch
      %18 = sbr.rel (%p16) target = $region17
    $region16: #{gcn_forward.1} parent=1 // pred_region
      %19 = vst [vmem:[#allocation2] sm:$0xff] 0.0
    $region17: #{gcn_forward.1} parent=1 // pred_fallthru
      _
    %v20 = vld [vmem:[%s0] sm:$0xff]
    %s21 = smul.u32 0, 128
    %s22 = scalar_lea.vmem %s1, %s21
    %v23 = vld [vmem:[%s22] sm:$0xff]
    %v24 = vld [vmem:[%s22 + $0x8] sm:$0xff]
    %v25 = vld [vmem:[%s22 + $0x10] sm:$0xff]
    %v26 = vld [vmem:[%s22 + $0x18] sm:$0xff]
    %v27 = vld [vmem:[%s22 + $0x20] sm:$0xff]
    %v28 = vld [vmem:[%s22 + $0x28] sm:$0xff]
    %v29 = vld [vmem:[%s22 + $0x30] sm:$0xff]
    %v30 = vld [vmem:[%s22 + $0x38] sm:$0xff]
    %v31 = vld [vmem:[%s22 + $0x40] sm:$0xff]
    %v32 = vld [vmem:[%s22 + $0x48] sm:$0xff]
    %v33 = vld [vmem:[%s22 + $0x50] sm:$0xff]
    %v34 = vld [vmem:[%s22 + $0x58] sm:$0xff]
    %v35 = vld [vmem:[%s22 + $0x60] sm:$0xff]
    %v36 = vld [vmem:[%s22 + $0x68] sm:$0xff]
    %v37 = vld [vmem:[%s22 + $0x70] sm:$0xff]
    %v38 = vld [vmem:[%s22 + $0x78] sm:$0xff]
    %v39 = vld [vmem:[#allocation2] sm:$0xff]
    %40 = vmatprep.subr.mxu0 0.0
    %41 = vmatpush1.msra.mxu0 %v23
    %42 = vmatprep.subr.mxu0 0.0
    %43 = vmatpush1.msra.mxu0 %v24
    %44 = vmatprep.subr.mxu0 0.0
    %45 = vmatpush1.msra.mxu0 %v25
    %46 = vmatprep.subr.mxu0 0.0
    %47 = vmatpush1.msra.mxu0 %v26
    %48 = vmatprep.subr.mxu0 0.0
    %49 = vmatpush1.msra.mxu0 %v27
    %50 = vmatprep.subr.mxu0 0.0
    %51 = vmatpush1.msra.mxu0 %v28
    %52 = vmatprep.subr.mxu0 0.0
    %53 = vmatpush1.msra.mxu0 %v29
    %54 = vmatprep.subr.mxu0 0.0
    %55 = vmatpush1.msra.mxu0 %v30
    %56 = vmatprep.subr.mxu0 0.0
    %57 = vmatpush1.msra.mxu0 %v31
    %58 = vmatprep.subr.mxu0 0.0
    %59 = vmatpush1.msra.mxu0 %v32
    %60 = vmatprep.subr.mxu0 0.0
    %61 = vmatpush1.msra.mxu0 %v33
    %62 = vmatprep.subr.mxu0 0.0
    %63 = vmatpush1.msra.mxu0 %v34
    %64 = vmatprep.subr.mxu0 0.0
    %65 = vmatpush1.msra.mxu0 %v35
    %66 = vmatprep.subr.mxu0 0.0
    %67 = vmatpush1.msra.mxu0 %v36
    %68 = vmatprep.subr.mxu0 0.0
    %69 = vmatpush1.msra.mxu0 %v37
    %70 = vmatprep.subr.mxu0 0.0
    %71 = vmatpush1.msra.mxu0 %v38
    %72 = vmatprep.subr.mxu0 0.0
    %73 = vmatpush1.msra.mxu0 0.0
    %74 = vmatprep.subr.mxu0 0.0
    %75 = vmatpush1.msra.mxu0 0.0
    %76 = vmatprep.subr.mxu0 0.0
    %77 = vmatpush1.msra.mxu0 0.0
    %78 = vmatprep.subr.mxu0 0.0
    %79 = vmatpush1.msra.mxu0 0.0
    %80 = vmatprep.subr.mxu0 0.0
    %81 = vmatpush1.msra.mxu0 0.0
    %82 = vmatprep.subr.mxu0 0.0
    %83 = vmatpush1.msra.mxu0 0.0
    %84 = vmatprep.subr.mxu0 0.0
    %85 = vmatpush1.msra.mxu0 0.0
    %86 = vmatprep.subr.mxu0 0.0
    %87 = vmatpush1.msra.mxu0 0.0
    %88 = vmatprep.subr.mxu0 0.0
    %89 = vmatpush1.msra.mxu0 0.0
    %90 = vmatprep.subr.mxu0 0.0
    %91 = vmatpush1.msra.mxu0 0.0
    %92 = vmatprep.subr.mxu0 0.0
    %93 = vmatpush1.msra.mxu0 0.0
    %94 = vmatprep.subr.mxu0 0.0
    %95 = vmatpush1.msra.mxu0 0.0
    %96 = vmatprep.subr.mxu0 0.0
    %97 = vmatpush1.msra.mxu0 0.0
    %98 = vmatprep.subr.mxu0 0.0
    %99 = vmatpush1.msra.mxu0 0.0
    %100 = vmatprep.subr.mxu0 0.0
    %101 = vmatpush1.msra.mxu0 0.0
    %102 = vmatprep.subr.mxu0 0.0
    %103 = vmatpush1.msra.mxu0 0.0
    %104 = vmatprep.mubr.f32.mxu0 0.0
    %105 = vmatmul.mubr.f32.gmra.mrb[0].mxu0 %v20
    %v106 = vpop.f32.mrb[0].mxu0
    %v107 = vadd.f32 0.0, %v106
    %v108 = vpop.f32.mrb[0].mxu0
    %109 = vdwg.mxu0
    %v110 = vadd.f32 %v39, %v107
    %111 = vst [vmem:[#allocation2] sm:$0xff] %v110
    // Predicated region
    $region18: #{gcn_forward.1} parent=1 // pred_check
      %p112 = pneg %p15
    $region19: #{gcn_forward.1} parent=1 // pred_check_branch
      %114 = sbr.rel (%p112) target = $region21
    $region20: #{gcn_forward.1} parent=1 // pred_region
      %v115 = vld [vmem:[#allocation2] sm:$0xff]
      %v116 = vld [vmem:[%s2] sm:$0x1]
      %v118 = vlaneseq
      %v119 = vshrl.u32 %v118, 7
      %v120 = vsub.s32 0, %v119
      %v121 = vrot.slane %v116, %v120
      %v123 = vadd.f32 %v115, %v121
      %v124 = vmax.f32 %v123, 0.0
      %125 = vst [vmem:[#allocation2] sm:$0xff] %v124
    $region21: #{gcn_forward.1} parent=1 // pred_fallthru
      _
    // Predicated region
    $region22: #{gcn_forward.1} parent=1 // pred_check
      _
    $region23: #{gcn_forward.1} parent=1 // pred_check_branch
      %127 = sbr.rel (0) target = $region25
    $region24: #{gcn_forward.1} parent=1 // pred_region
      %s129 = ssub.s32 128, 128
      %130 = vsyncadd [#allocation3], %s129
      %s132 = sshll.u32 [#allocation2], 4
      %s133 = int_to_ptr.vmem [resolvable:$true] %s132
      %135 = dma.vmem_to_hbm [thread:$0]  %s133, 128, %s3, [#allocation3]
    $region25: #{gcn_forward.1} parent=1 // pred_fallthru
      _
    // Predicated region
    $region26: #{gcn_forward.1} parent=1 // pred_check
      _
    $region27: #{gcn_forward.1} parent=1 // pred_check_branch
      %137 = sbr.rel (0) target = $region29
    $region28: #{gcn_forward.1} parent=1 // pred_region
      %138 = dma.done [#allocation3], 128
    $region29: #{gcn_forward.1} parent=1 // pred_fallthru
      _
    %139 = vsyncpa [#allocation3], 1

</llo_original>
